<compile_context>
chip_gen: v7x
topology: tpu7x:2x2x1
jax: 0.10.0
libtpu: 0.0.40
codegen_flags: <defaults>
</compile_context>

<pallas_src>
import jax
import jax.numpy as jnp
from jax.experimental import pallas as pl
from jax.experimental.pallas import tpu as pltpu


def _round_up(x, m):
    return ((x + m - 1) // m) * m


def _decoder_mlp_kernel(z_ref,
                        w1_ref, b1_ref,
                        w2_ref, b2_ref,
                        w3_ref, b3_ref,
                        w4_ref, b4_ref,
                        out_ref):
    """Fused 4-layer MLP (3x Linear+ReLU, 1x Linear) on one batch tile.

    Matmul operands are bf16 (MXU-native); accumulation, bias and ReLU in f32.
    """
    x = z_ref[...]                                              # bf16 (tile, L)

    h = jnp.dot(x, w1_ref[...], preferred_element_type=jnp.float32) + b1_ref[...]
    h = jnp.maximum(h, 0.0).astype(jnp.bfloat16)

    h = jnp.dot(h, w2_ref[...], preferred_element_type=jnp.float32) + b2_ref[...]
    h = jnp.maximum(h, 0.0).astype(jnp.bfloat16)

    h = jnp.dot(h, w3_ref[...], preferred_element_type=jnp.float32) + b3_ref[...]
    h = jnp.maximum(h, 0.0).astype(jnp.bfloat16)

    y = jnp.dot(h, w4_ref[...], preferred_element_type=jnp.float32) + b4_ref[...]
    out_ref[...] = y.astype(out_ref.dtype)                      # lane-dense store


def decoder_forward(z, params, *, num_output, tile_m=256):
    """Run the Decoder MLP via pallas_call and reshape to (bs, num_output, 3)."""
    (w1, b1), (w2, b2), (w3, b3), (w4, b4) = params
    bs, latent_dim = z.shape
    hidden = w1.shape[1]
    out_dim = w4.shape[1]
    assert out_dim == 3 * num_output

    # MXU-facing operands in bf16; biases stay f32 (added to the f32 accumulator).
    zb = z.astype(jnp.bfloat16)
    w1b, w2b, w3b, w4b = (w.astype(jnp.bfloat16) for w in (w1, w2, w3, w4))
    b1f, b2f, b3f, b4f = (b.astype(jnp.float32) for b in (b1, b2, b3, b4))

    # Batch tiling: pick the number of grid steps from the requested tile, then
    # shrink the tile to the smallest 8-aligned size that still covers the batch
    # in that many steps (minimizes padded rows instead of rounding bs up to a
    # full extra tile).
    tile_req = max(8, min(_round_up(tile_m, 8), _round_up(bs, 8)))
    n_tiles = pl.cdiv(bs, tile_req)
    tile = _round_up(pl.cdiv(bs, n_tiles), 8)
    bs_pad = n_tiles * tile
    if bs_pad != bs:
        zb = jnp.pad(zb, ((0, bs_pad - bs), (0, 0)))
    grid = (n_tiles,)

    full = lambda i: (0, 0)          # weights / biases: same block every step
    by_row = lambda i: (i, 0)        # activations: tiled over (padded) batch

    flops = 2 * bs_pad * (latent_dim * hidden + 2 * hidden * hidden
                          + hidden * out_dim)
    bytes_accessed = (
        bs_pad * latent_dim * 2                                   # z (bf16)
        + 2 * (latent_dim * hidden + 2 * hidden * hidden + hidden * out_dim)
        + 4 * (3 * hidden + out_dim)                              # biases (f32)
        + bs_pad * out_dim * 4)                                   # output (f32)

    flat = pl.pallas_call(
        _decoder_mlp_kernel,
        out_shape=jax.ShapeDtypeStruct((bs_pad, out_dim), jnp.float32),
        grid_spec=pltpu.PrefetchScalarGridSpec(
            num_scalar_prefetch=0,
            grid=grid,
            in_specs=[
                pl.BlockSpec((tile, latent_dim), by_row),     # z
                pl.BlockSpec((latent_dim, hidden), full),     # w1
                pl.BlockSpec((1, hidden), full),              # b1
                pl.BlockSpec((hidden, hidden), full),         # w2
                pl.BlockSpec((1, hidden), full),              # b2
                pl.BlockSpec((hidden, hidden), full),         # w3
                pl.BlockSpec((1, hidden), full),              # b3
                pl.BlockSpec((hidden, out_dim), full),        # w4
                pl.BlockSpec((1, out_dim), full),             # b4
            ],
            out_specs=pl.BlockSpec((tile, out_dim), by_row),
        ),
        compiler_params=pltpu.CompilerParams(
            dimension_semantics=("parallel",),
            vmem_limit_bytes=64 * 1024 * 1024,
        ),
        cost_estimate=pl.CostEstimate(
            flops=flops, transcendentals=0, bytes_accessed=bytes_accessed),
    )(zb, w1b, b1f, w2b, b2f, w3b, b3f, w4b, b4f)

    # PyTorch: .reshape(bs, -1, 3) — row-major, identical semantics here.
    return flat[:bs].reshape(bs, num_output, 3)


def init_decoder_params(key, latent_dim, hidden, num_output, dtype=jnp.float32):
    """Deterministic synthetic init (uniform, fan-in scaled), weights as (in, out)."""
    dims = [(latent_dim, hidden), (hidden, hidden), (hidden, hidden),
            (hidden, 3 * num_output)]
    params = []
    for (fan_in, fan_out) in dims:
        key, kw, kb = jax.random.split(key, 3)
        bound = 1.0 / jnp.sqrt(fan_in)
        w = jax.random.uniform(kw, (fan_in, fan_out), dtype, -bound, bound)
        b = jax.random.uniform(kb, (1, fan_out), dtype, -bound, bound)
        params.append((w, b))
    return params


def decoder_ref(z, params, num_output):
    """Pure-JAX f32 reference for correctness checking."""
    (w1, b1), (w2, b2), (w3, b3), (w4, b4) = params
    h = jnp.maximum(z @ w1 + b1, 0.0)
    h = jnp.maximum(h @ w2 + b2, 0.0)
    h = jnp.maximum(h @ w3 + b3, 0.0)
    y = h @ w4 + b4
    return y.reshape(z.shape[0], num_output, 3)


if __name__ == "__main__":
    # Small shapes consistent with the module (scaled-down latent/hidden/output).
    BS = 37                   # deliberately not a multiple of the tile: exercises padding
    LATENT_DIM = 128
    HIDDEN = 256
    NUM_OUTPUT = 128          # final linear emits 3 * NUM_OUTPUT = 384 features

    key = jax.random.PRNGKey(0)
    key, kz = jax.random.split(key)
    z = jax.random.normal(kz, (BS, LATENT_DIM), dtype=jnp.float32)

    params = init_decoder_params(key, LATENT_DIM, HIDDEN, NUM_OUTPUT)
    ref = decoder_ref(z, params, NUM_OUTPUT)

    # Default big-tile path (tile clamps to the padded batch, single grid step).
    pcd = decoder_forward(z, params, num_output=NUM_OUTPUT)
    pcd = jax.block_until_ready(pcd)
    assert pcd.shape == (BS, NUM_OUTPUT, 3), pcd.shape
    assert jnp.allclose(pcd, ref, atol=2e-2, rtol=2e-2), "mismatch vs reference (big tile)"

    # Multi-step grid path (padding + several batch tiles, parallel grid axis).
    pcd2 = decoder_forward(z, params, num_output=NUM_OUTPUT, tile_m=16)
    pcd2 = jax.block_until_ready(pcd2)
    assert pcd2.shape == (BS, NUM_OUTPUT, 3), pcd2.shape
    assert jnp.allclose(pcd2, ref, atol=2e-2, rtol=2e-2), "mismatch vs reference (tiled)"

    print("KERNEL_OK")
</pallas_src>

<mosaic_0001>
module attributes {stable_mosaic.version = 11 : i64} {
  func.func @_decoder_mlp_kernel(%arg0: i32, %arg1: memref<40x128xbf16, #tpu.memory_space<vmem>>, %arg2: memref<128x256xbf16, #tpu.memory_space<vmem>>, %arg3: memref<1x256xf32, #tpu.memory_space<vmem>>, %arg4: memref<256x256xbf16, #tpu.memory_space<vmem>>, %arg5: memref<1x256xf32, #tpu.memory_space<vmem>>, %arg6: memref<256x256xbf16, #tpu.memory_space<vmem>>, %arg7: memref<1x256xf32, #tpu.memory_space<vmem>>, %arg8: memref<256x384xbf16, #tpu.memory_space<vmem>>, %arg9: memref<1x384xf32, #tpu.memory_space<vmem>>, %arg10: memref<40x384xf32, #tpu.memory_space<vmem>>) attributes {dimension_semantics = [#tpu.dimension_semantics<parallel>], iteration_bounds = array<i64: 1>, scalar_prefetch = 0 : i64, scratch_operands = 0 : i64, tpu.core_type = #tpu.core_type<tc>, window_params = [{transform_indices = @transform_0, window_bounds = array<i64: 40, 128>}, {pipeline_mode = #tpu.pipeline_mode<synchronous>, transform_indices = @transform_1, window_bounds = array<i64: 128, 256>}, {pipeline_mode = #tpu.pipeline_mode<synchronous>, transform_indices = @transform_2, window_bounds = array<i64: 1, 256>}, {pipeline_mode = #tpu.pipeline_mode<synchronous>, transform_indices = @transform_3, window_bounds = array<i64: 256, 256>}, {pipeline_mode = #tpu.pipeline_mode<synchronous>, transform_indices = @transform_4, window_bounds = array<i64: 1, 256>}, {pipeline_mode = #tpu.pipeline_mode<synchronous>, transform_indices = @transform_5, window_bounds = array<i64: 256, 256>}, {pipeline_mode = #tpu.pipeline_mode<synchronous>, transform_indices = @transform_6, window_bounds = array<i64: 1, 256>}, {pipeline_mode = #tpu.pipeline_mode<synchronous>, transform_indices = @transform_7, window_bounds = array<i64: 256, 384>}, {pipeline_mode = #tpu.pipeline_mode<synchronous>, transform_indices = @transform_8, window_bounds = array<i64: 1, 384>}, {transform_indices = @transform_9, window_bounds = array<i64: 40, 384>}]} {
    %c0 = arith.constant 0 : index
    %c0_0 = arith.constant 0 : index
    %0 = vector.load %arg1[%c0, %c0_0] : memref<40x128xbf16, #tpu.memory_space<vmem>>, vector<40x128xbf16>
    %c0_1 = arith.constant 0 : index
    %c0_2 = arith.constant 0 : index
    %1 = vector.load %arg2[%c0_1, %c0_2] : memref<128x256xbf16, #tpu.memory_space<vmem>>, vector<128x256xbf16>
    %cst = arith.constant dense<0.000000e+00> : vector<40x256xf32>
    %2 = tpu.matmul %0, %1, %cst {dimension_numbers = #tpu.dot_dimension_numbers<[1], [0], [0], [1], [0, 0, 1, 1], [], []>} : vector<40x128xbf16>, vector<128x256xbf16>, vector<40x256xf32> -> vector<40x256xf32>
    %c0_3 = arith.constant 0 : index
    %c0_4 = arith.constant 0 : index
    %3 = vector.load %arg3[%c0_3, %c0_4] : memref<1x256xf32, #tpu.memory_space<vmem>>, vector<1x256xf32>
    %4 = vector.broadcast %3 : vector<1x256xf32> to vector<40x256xf32>
    %5 = arith.addf %2, %4 : vector<40x256xf32>
    %cst_5 = arith.constant 0.000000e+00 : f32
    %6 = vector.broadcast %cst_5 : f32 to vector<40x256xf32>
    %7 = arith.maximumf %5, %6 : vector<40x256xf32>
    %8 = arith.truncf %7 : vector<40x256xf32> to vector<40x256xbf16>
    %c0_6 = arith.constant 0 : index
    %c0_7 = arith.constant 0 : index
    %9 = vector.load %arg4[%c0_6, %c0_7] : memref<256x256xbf16, #tpu.memory_space<vmem>>, vector<256x256xbf16>
    %cst_8 = arith.constant dense<0.000000e+00> : vector<40x256xf32>
    %10 = tpu.matmul %8, %9, %cst_8 {dimension_numbers = #tpu.dot_dimension_numbers<[1], [0], [0], [1], [0, 0, 1, 1], [], []>} : vector<40x256xbf16>, vector<256x256xbf16>, vector<40x256xf32> -> vector<40x256xf32>
    %c0_9 = arith.constant 0 : index
    %c0_10 = arith.constant 0 : index
    %11 = vector.load %arg5[%c0_9, %c0_10] : memref<1x256xf32, #tpu.memory_space<vmem>>, vector<1x256xf32>
    %12 = vector.broadcast %11 : vector<1x256xf32> to vector<40x256xf32>
    %13 = arith.addf %10, %12 : vector<40x256xf32>
    %cst_11 = arith.constant 0.000000e+00 : f32
    %14 = vector.broadcast %cst_11 : f32 to vector<40x256xf32>
    %15 = arith.maximumf %13, %14 : vector<40x256xf32>
    %16 = arith.truncf %15 : vector<40x256xf32> to vector<40x256xbf16>
    %c0_12 = arith.constant 0 : index
    %c0_13 = arith.constant 0 : index
    %17 = vector.load %arg6[%c0_12, %c0_13] : memref<256x256xbf16, #tpu.memory_space<vmem>>, vector<256x256xbf16>
    %cst_14 = arith.constant dense<0.000000e+00> : vector<40x256xf32>
    %18 = tpu.matmul %16, %17, %cst_14 {dimension_numbers = #tpu.dot_dimension_numbers<[1], [0], [0], [1], [0, 0, 1, 1], [], []>} : vector<40x256xbf16>, vector<256x256xbf16>, vector<40x256xf32> -> vector<40x256xf32>
    %c0_15 = arith.constant 0 : index
    %c0_16 = arith.constant 0 : index
    %19 = vector.load %arg7[%c0_15, %c0_16] : memref<1x256xf32, #tpu.memory_space<vmem>>, vector<1x256xf32>
    %20 = vector.broadcast %19 : vector<1x256xf32> to vector<40x256xf32>
    %21 = arith.addf %18, %20 : vector<40x256xf32>
    %cst_17 = arith.constant 0.000000e+00 : f32
    %22 = vector.broadcast %cst_17 : f32 to vector<40x256xf32>
    %23 = arith.maximumf %21, %22 : vector<40x256xf32>
    %24 = arith.truncf %23 : vector<40x256xf32> to vector<40x256xbf16>
    %c0_18 = arith.constant 0 : index
    %c0_19 = arith.constant 0 : index
    %25 = vector.load %arg8[%c0_18, %c0_19] : memref<256x384xbf16, #tpu.memory_space<vmem>>, vector<256x384xbf16>
    %cst_20 = arith.constant dense<0.000000e+00> : vector<40x384xf32>
    %26 = tpu.matmul %24, %25, %cst_20 {dimension_numbers = #tpu.dot_dimension_numbers<[1], [0], [0], [1], [0, 0, 1, 1], [], []>} : vector<40x256xbf16>, vector<256x384xbf16>, vector<40x384xf32> -> vector<40x384xf32>
    %c0_21 = arith.constant 0 : index
    %c0_22 = arith.constant 0 : index
    %27 = vector.load %arg9[%c0_21, %c0_22] : memref<1x384xf32, #tpu.memory_space<vmem>>, vector<1x384xf32>
    %28 = vector.broadcast %27 : vector<1x384xf32> to vector<40x384xf32>
    %29 = arith.addf %26, %28 : vector<40x384xf32>
    %c0_23 = arith.constant 0 : index
    %c0_24 = arith.constant 0 : index
    %30 = vector.load %arg10[%c0_23, %c0_24] : memref<40x384xf32, #tpu.memory_space<vmem>>, vector<40x384xf32>
    tpu.vector_store %arg10[%c0_23, %c0_24], %29 {strides = array<i32>} : memref<40x384xf32, #tpu.memory_space<vmem>>, vector<40x384xf32>,
    return
  }
  func.func @transform_0(%arg0: i32) -> (i32, i32) {
    %c0_i32 = arith.constant 0 : i32
    %c0_i32_0 = arith.constant 0 : i32
    return %arg0, %c0_i32 : i32, i32
  }
  func.func @transform_1(%arg0: i32) -> (i32, i32) {
    %c0_i32 = arith.constant 0 : i32
    %c0_i32_0 = arith.constant 0 : i32
    %c0_i32_1 = arith.constant 0 : i32
    return %c0_i32, %c0_i32_0 : i32, i32
  }
  func.func @transform_2(%arg0: i32) -> (i32, i32) {
    %c0_i32 = arith.constant 0 : i32
    %c0_i32_0 = arith.constant 0 : i32
    %c0_i32_1 = arith.constant 0 : i32
    return %c0_i32, %c0_i32_0 : i32, i32
  }
  func.func @transform_3(%arg0: i32) -> (i32, i32) {
    %c0_i32 = arith.constant 0 : i32
    %c0_i32_0 = arith.constant 0 : i32
    %c0_i32_1 = arith.constant 0 : i32
    return %c0_i32, %c0_i32_0 : i32, i32
  }
  func.func @transform_4(%arg0: i32) -> (i32, i32) {
    %c0_i32 = arith.constant 0 : i32
    %c0_i32_0 = arith.constant 0 : i32
    %c0_i32_1 = arith.constant 0 : i32
    return %c0_i32, %c0_i32_0 : i32, i32
  }
  func.func @transform_5(%arg0: i32) -> (i32, i32) {
    %c0_i32 = arith.constant 0 : i32
    %c0_i32_0 = arith.constant 0 : i32
    %c0_i32_1 = arith.constant 0 : i32
    return %c0_i32, %c0_i32_0 : i32, i32
  }
  func.func @transform_6(%arg0: i32) -> (i32, i32) {
    %c0_i32 = arith.constant 0 : i32
    %c0_i32_0 = arith.constant 0 : i32
    %c0_i32_1 = arith.constant 0 : i32
    return %c0_i32, %c0_i32_0 : i32, i32
  }
  func.func @transform_7(%arg0: i32) -> (i32, i32) {
    %c0_i32 = arith.constant 0 : i32
    %c0_i32_0 = arith.constant 0 : i32
    %c0_i32_1 = arith.constant 0 : i32
    return %c0_i32, %c0_i32_0 : i32, i32
  }
  func.func @transform_8(%arg0: i32) -> (i32, i32) {
    %c0_i32 = arith.constant 0 : i32
    %c0_i32_0 = arith.constant 0 : i32
    %c0_i32_1 = arith.constant 0 : i32
    return %c0_i32, %c0_i32_0 : i32, i32
  }
  func.func @transform_9(%arg0: i32) -> (i32, i32) {
    %c0_i32 = arith.constant 0 : i32
    %c0_i32_0 = arith.constant 0 : i32
    return %arg0, %c0_i32 : i32, i32
  }
}

</mosaic_0001>

<llo_original>
// kernel: tpu_custom_call.1
$region0: #{tpu_custom_call.1}
  #allocation0 [shape = 'u32[]', space=smem, size = 0x4, offset = 0x4, fixed_abs, tag = 'smem constant byte address 0x4 - core index']
  #allocation1 [shape = 'u32[144,128]{1,0:T(1,128)}', space=vmem, size = 0x12000, scoped, tag = 'internal scratch']
  %s0 = inlined_call_operand.hbm [shape: bf16[40,128], index: 0, kind: input, shape index: {}]
  %s1 = inlined_call_operand.hbm [shape: bf16[128,256], index: 1, kind: input, shape index: {}]
  %s2 = inlined_call_operand.hbm [shape: f32[1,256], index: 2, kind: input, shape index: {}]
  %s3 = inlined_call_operand.hbm [shape: bf16[256,256], index: 3, kind: input, shape index: {}]
  %s4 = inlined_call_operand.hbm [shape: f32[1,256], index: 4, kind: input, shape index: {}]
  %s5 = inlined_call_operand.hbm [shape: bf16[256,256], index: 5, kind: input, shape index: {}]
  %s6 = inlined_call_operand.hbm [shape: f32[1,256], index: 6, kind: input, shape index: {}]
  %s7 = inlined_call_operand.hbm [shape: bf16[256,384], index: 7, kind: input, shape index: {}]
  %s8 = inlined_call_operand.hbm [shape: f32[1,384], index: 8, kind: input, shape index: {}]
  %s9 = inlined_call_operand.hbm [shape: f32[40,384], index: 9, kind: output, shape index: {}]
  %s10 = sld [smem:[#allocation0]]
  $region82: #{tpu_custom_call.1} parent=0
    _
  %s12 = ssub.s32 1, %s10
  %s13 = scalar_select 0, %s12, %s10
  $region1: #{tpu_custom_call.1} parent=0
    #allocation2 [shape = 'u8[10240]{0}', space=vmem, size = 0x2800, scoped, tag = 'input window, operand 0, single buffered']
    #allocation3 [shape = 's32[1]{0}', space=sflag, size = 0x4, scoped, tag = 'scoped memory for tpu_custom_call.1']
    #allocation4 [shape = 's32[1]{0}', space=sflag, size = 0x4, scoped, tag = 'scoped memory for tpu_custom_call.1']
    #allocation5 [shape = 'u8[65536]{0}', space=vmem, size = 0x10000, scoped, tag = 'input window, operand 1, single buffered']
    #allocation6 [shape = 's32[1]{0}', space=sflag, size = 0x4, scoped, tag = 'scoped memory for tpu_custom_call.1']
    #allocation7 [shape = 'u8[1024]{0}', space=vmem, size = 0x400, scoped, tag = 'input window, operand 2, single buffered']
    #allocation8 [shape = 'u8[131072]{0}', space=vmem, size = 0x20000, scoped, tag = 'input window, operand 3, single buffered']
    #allocation9 [shape = 's32[1]{0}', space=sflag, size = 0x4, scoped, tag = 'scoped memory for tpu_custom_call.1']
    #allocation10 [shape = 'u8[1024]{0}', space=vmem, size = 0x400, scoped, tag = 'input window, operand 4, single buffered']
    #allocation11 [shape = 'u8[131072]{0}', space=vmem, size = 0x20000, scoped, tag = 'input window, operand 5, single buffered']
    #allocation12 [shape = 's32[1]{0}', space=sflag, size = 0x4, scoped, tag = 'scoped memory for tpu_custom_call.1']
    #allocation13 [shape = 'u8[1024]{0}', space=vmem, size = 0x400, scoped, tag = 'input window, operand 6, single buffered']
    #allocation14 [shape = 'u8[196608]{0}', space=vmem, size = 0x30000, scoped, tag = 'input window, operand 7, single buffered']
    #allocation15 [shape = 's32[1]{0}', space=sflag, size = 0x4, scoped, tag = 'scoped memory for tpu_custom_call.1']
    #allocation16 [shape = 'u8[1536]{0}', space=vmem, size = 0x800, scoped, tag = 'input window, operand 8, single buffered']
    #allocation17 [shape = 'u8[61440]{0}', space=vmem, size = 0xf000, scoped, tag = 'output window, operand 0, single buffered']
    %14 = vsyncpa [#allocation3], 0
    %15 = vsyncpa [#allocation6], 0
    %16 = vsyncpa [#allocation9], 0
    %17 = vsyncpa [#allocation12], 0
    %18 = vsyncpa [#allocation15], 0
    %19 = vsyncpa [#allocation4], 0
    // Predicated region
    $region2: #{tpu_custom_call.1} parent=1 // pred_check
      _
    $region3: #{tpu_custom_call.1} parent=1 // pred_check_branch
      %21 = sbr.rel (0) target = $region5
    $region4: #{tpu_custom_call.1} parent=1 // pred_region
      %s23 = ssub.s32 320, 320
      %24 = vsyncadd [#allocation3], %s23
      %s25 = sshll.u32 [#allocation2], 4
      %s26 = int_to_ptr.vmem [resolvable:$true] %s25
      %31 = dma.hbm_to_vmem [thread:$0]  %s0, 320, %s26, [#allocation3], 64, 64, 4
    $region5: #{tpu_custom_call.1} parent=1 // pred_fallthru
      _
    // Predicated region
    $region6: #{tpu_custom_call.1} parent=1 // pred_check
      _
    $region7: #{tpu_custom_call.1} parent=1 // pred_check_branch
      %33 = sbr.rel (0) target = $region9
    $region8: #{tpu_custom_call.1} parent=1 // pred_region
      %s35 = ssub.s32 2048, 2048
      %36 = vsyncadd [#allocation6], %s35
      %s37 = sshll.u32 [#allocation5], 4
      %s38 = int_to_ptr.vmem [resolvable:$true] %s37
      %43 = dma.hbm_to_vmem [thread:$0]  %s1, 2048, %s38, [#allocation6], 128, 128, 8
    $region9: #{tpu_custom_call.1} parent=1 // pred_fallthru
      _
    // Predicated region
    $region10: #{tpu_custom_call.1} parent=1 // pred_check
      _
    $region11: #{tpu_custom_call.1} parent=1 // pred_check_branch
      %45 = sbr.rel (0) target = $region13
    $region12: #{tpu_custom_call.1} parent=1 // pred_region
      %s47 = ssub.s32 32, 32
      %48 = vsyncadd [#allocation6], %s47
      %s50 = sshll.u32 [#allocation7], 4
      %s51 = int_to_ptr.vmem [resolvable:$true] %s50
      %53 = dma.hbm_to_vmem [thread:$0]  %s2, 32, %s51, [#allocation6]
    $region13: #{tpu_custom_call.1} parent=1 // pred_fallthru
      _
    // Predicated region
    $region14: #{tpu_custom_call.1} parent=1 // pred_check
      _
    $region15: #{tpu_custom_call.1} parent=1 // pred_check_branch
      %55 = sbr.rel (0) target = $region17
    $region16: #{tpu_custom_call.1} parent=1 // pred_region
      %s57 = ssub.s32 4096, 4096
      %58 = vsyncadd [#allocation9], %s57
      %s59 = sshll.u32 [#allocation8], 4
      %s60 = int_to_ptr.vmem [resolvable:$true] %s59
      %65 = dma.hbm_to_vmem [thread:$0]  %s3, 4096, %s60, [#allocation9], 128, 128, 8
    $region17: #{tpu_custom_call.1} parent=1 // pred_fallthru
      _
    // Predicated region
    $region18: #{tpu_custom_call.1} parent=1 // pred_check
      _
    $region19: #{tpu_custom_call.1} parent=1 // pred_check_branch
      %67 = sbr.rel (0) target = $region21
    $region20: #{tpu_custom_call.1} parent=1 // pred_region
      %s69 = ssub.s32 32, 32
      %70 = vsyncadd [#allocation9], %s69
      %s72 = sshll.u32 [#allocation10], 4
      %s73 = int_to_ptr.vmem [resolvable:$true] %s72
      %75 = dma.hbm_to_vmem [thread:$0]  %s4, 32, %s73, [#allocation9]
    $region21: #{tpu_custom_call.1} parent=1 // pred_fallthru
      _
    // Predicated region
    $region22: #{tpu_custom_call.1} parent=1 // pred_check
      _
    $region23: #{tpu_custom_call.1} parent=1 // pred_check_branch
      %77 = sbr.rel (0) target = $region25
    $region24: #{tpu_custom_call.1} parent=1 // pred_region
      %s79 = ssub.s32 4096, 4096
      %80 = vsyncadd [#allocation12], %s79
      %s81 = sshll.u32 [#allocation11], 4
      %s82 = int_to_ptr.vmem [resolvable:$true] %s81
      %87 = dma.hbm_to_vmem [thread:$0]  %s5, 4096, %s82, [#allocation12], 128, 128, 8
    $region25: #{tpu_custom_call.1} parent=1 // pred_fallthru
      _
    // Predicated region
    $region26: #{tpu_custom_call.1} parent=1 // pred_check
      _
    $region27: #{tpu_custom_call.1} parent=1 // pred_check_branch
      %89 = sbr.rel (0) target = $region29
    $region28: #{tpu_custom_call.1} parent=1 // pred_region
      %s91 = ssub.s32 32, 32
      %92 = vsyncadd [#allocation12], %s91
      %s94 = sshll.u32 [#allocation13], 4
      %s95 = int_to_ptr.vmem [resolvable:$true] %s94
      %97 = dma.hbm_to_vmem [thread:$0]  %s6, 32, %s95, [#allocation12]
    $region29: #{tpu_custom_call.1} parent=1 // pred_fallthru
      _
    // Predicated region
    $region30: #{tpu_custom_call.1} parent=1 // pred_check
      _
    $region31: #{tpu_custom_call.1} parent=1 // pred_check_branch
      %99 = sbr.rel (0) target = $region33
    $region32: #{tpu_custom_call.1} parent=1 // pred_region
      %s101 = ssub.s32 6144, 6144
      %102 = vsyncadd [#allocation15], %s101
      %s103 = sshll.u32 [#allocation14], 4
      %s104 = int_to_ptr.vmem [resolvable:$true] %s103
      %109 = dma.hbm_to_vmem [thread:$0]  %s7, 6144, %s104, [#allocation15], 192, 192, 12
    $region33: #{tpu_custom_call.1} parent=1 // pred_fallthru
      _
    // Predicated region
    $region34: #{tpu_custom_call.1} parent=1 // pred_check
      _
    $region35: #{tpu_custom_call.1} parent=1 // pred_check_branch
      %111 = sbr.rel (0) target = $region37
    $region36: #{tpu_custom_call.1} parent=1 // pred_region
      %s113 = ssub.s32 48, 48
      %114 = vsyncadd [#allocation15], %s113
      %s116 = sshll.u32 [#allocation16], 4
      %s117 = int_to_ptr.vmem [resolvable:$true] %s116
      %119 = dma.hbm_to_vmem [thread:$0]  %s8, 48, %s117, [#allocation15]
    $region37: #{tpu_custom_call.1} parent=1 // pred_fallthru
      _
    // Predicated region
    $region38: #{tpu_custom_call.1} parent=1 // pred_check
      _
    $region39: #{tpu_custom_call.1} parent=1 // pred_check_branch
      %121 = sbr.rel (0) target = $region41
    $region40: #{tpu_custom_call.1} parent=1 // pred_region
      %122 = dma.done [#allocation3], 320
    $region41: #{tpu_custom_call.1} parent=1 // pred_fallthru
      _
    // Predicated region
    $region42: #{tpu_custom_call.1} parent=1 // pred_check
      _
    $region43: #{tpu_custom_call.1} parent=1 // pred_check_branch
      %124 = sbr.rel (0) target = $region45
    $region44: #{tpu_custom_call.1} parent=1 // pred_region
      %125 = dma.done [#allocation6], 2048
    $region45: #{tpu_custom_call.1} parent=1 // pred_fallthru
      _
    // Predicated region
    $region46: #{tpu_custom_call.1} parent=1 // pred_check
      _
    $region47: #{tpu_custom_call.1} parent=1 // pred_check_branch
      %127 = sbr.rel (0) target = $region49
    $region48: #{tpu_custom_call.1} parent=1 // pred_region
      %128 = dma.done [#allocation6], 32
    $region49: #{tpu_custom_call.1} parent=1 // pred_fallthru
      _
    // Predicated region
    $region50: #{tpu_custom_call.1} parent=1 // pred_check
      _
    $region51: #{tpu_custom_call.1} parent=1 // pred_check_branch
      %130 = sbr.rel (0) target = $region53
    $region52: #{tpu_custom_call.1} parent=1 // pred_region
      %131 = dma.done [#allocation9], 4096
    $region53: #{tpu_custom_call.1} parent=1 // pred_fallthru
      _
    // Predicated region
    $region54: #{tpu_custom_call.1} parent=1 // pred_check
      _
    $region55: #{tpu_custom_call.1} parent=1 // pred_check_branch
      %133 = sbr.rel (0) target = $region57
    $region56: #{tpu_custom_call.1} parent=1 // pred_region
      %134 = dma.done [#allocation9], 32
    $region57: #{tpu_custom_call.1} parent=1 // pred_fallthru
      _
    // Predicated region
    $region58: #{tpu_custom_call.1} parent=1 // pred_check
      _
    $region59: #{tpu_custom_call.1} parent=1 // pred_check_branch
      %136 = sbr.rel (0) target = $region61
    $region60: #{tpu_custom_call.1} parent=1 // pred_region
      %137 = dma.done [#allocation12], 4096
    $region61: #{tpu_custom_call.1} parent=1 // pred_fallthru
      _
    // Predicated region
    $region62: #{tpu_custom_call.1} parent=1 // pred_check
      _
    $region63: #{tpu_custom_call.1} parent=1 // pred_check_branch
      %139 = sbr.rel (0) target = $region65
    $region64: #{tpu_custom_call.1} parent=1 // pred_region
      %140 = dma.done [#allocation12], 32
    $region65: #{tpu_custom_call.1} parent=1 // pred_fallthru
      _
    // Predicated region
    $region66: #{tpu_custom_call.1} parent=1 // pred_check
      _
    $region67: #{tpu_custom_call.1} parent=1 // pred_check_branch
      %142 = sbr.rel (0) target = $region69
    $region68: #{tpu_custom_call.1} parent=1 // pred_region
      %143 = dma.done [#allocation15], 6144
    $region69: #{tpu_custom_call.1} parent=1 // pred_fallthru
      _
    // Predicated region
    $region70: #{tpu_custom_call.1} parent=1 // pred_check
      _
    $region71: #{tpu_custom_call.1} parent=1 // pred_check_branch
      %145 = sbr.rel (0) target = $region73
    $region72: #{tpu_custom_call.1} parent=1 // pred_region
      %146 = dma.done [#allocation15], 48
    $region73: #{tpu_custom_call.1} parent=1 // pred_fallthru
      _
    %v148 = vld [vmem:[#allocation2] sm:$0xf]
    %v149 = vld [vmem:[#allocation2 + $0x4] sm:$0xf]
    %v150 = vld [vmem:[#allocation2 + $0x8] sm:$0xf]
    %v151 = vld [vmem:[#allocation2 + $0xc] sm:$0xf]
    %v152 = vld [vmem:[#allocation2 + $0x10] sm:$0xf]
    %v153 = vld [vmem:[#allocation5] sm:$0xff]
    %v154 = vld [vmem:[#allocation5 + $0x8] sm:$0xff]
    %v155 = vld [vmem:[#allocation5 + $0x10] sm:$0xff]
    %v156 = vld [vmem:[#allocation5 + $0x18] sm:$0xff]
    %v157 = vld [vmem:[#allocation5 + $0x20] sm:$0xff]
    %v158 = vld [vmem:[#allocation5 + $0x28] sm:$0xff]
    %v159 = vld [vmem:[#allocation5 + $0x30] sm:$0xff]
    %v160 = vld [vmem:[#allocation5 + $0x38] sm:$0xff]
    %v161 = vld [vmem:[#allocation5 + $0x40] sm:$0xff]
    %v162 = vld [vmem:[#allocation5 + $0x48] sm:$0xff]
    %v163 = vld [vmem:[#allocation5 + $0x50] sm:$0xff]
    %v164 = vld [vmem:[#allocation5 + $0x58] sm:$0xff]
    %v165 = vld [vmem:[#allocation5 + $0x60] sm:$0xff]
    %v166 = vld [vmem:[#allocation5 + $0x68] sm:$0xff]
    %v167 = vld [vmem:[#allocation5 + $0x70] sm:$0xff]
    %v168 = vld [vmem:[#allocation5 + $0x78] sm:$0xff]
    %v169 = vld [vmem:[#allocation7] sm:$0x3]
    %v171 = vlaneseq
    %v172 = vshrl.u32 %v171, 7
    %v173 = vsub.s32 0, %v172
    %v174 = vrot.slane %v169, %v173
    %v175 = vlaneseq
    %v176 = vshrl.u32 %v175, 7
    %v177 = vsub.s32 1, %v176
    %v178 = vrot.slane %v169, %v177
    %v186 = vunpack.c.l.b16 %v148
    %v187 = vunpack.c.l.b16 %v149
    %v188 = vunpack.c.l.b16 %v150
    %v189 = vunpack.c.l.b16 %v151
    %v190 = vunpack.c.l.b16 %v152
    %v191 = vpack.c.b16 %v187, %v186
    %v192 = vpack.c.b16 %v189, %v188
    %v193 = vpack.c.b16 %v190, %v190
    %v213 = vunpack.c.l.b16 %v153
    %v214 = vunpack.c.h.b16 %v153
    %v215 = vunpack.c.l.b16 %v154
    %v216 = vunpack.c.h.b16 %v154
    %v217 = vunpack.c.l.b16 %v155
    %v218 = vunpack.c.h.b16 %v155
    %v219 = vunpack.c.l.b16 %v156
    %v220 = vunpack.c.h.b16 %v156
    %v221 = vunpack.c.l.b16 %v157
    %v222 = vunpack.c.h.b16 %v157
    %v223 = vunpack.c.l.b16 %v158
    %v224 = vunpack.c.h.b16 %v158
    %v225 = vunpack.c.l.b16 %v159
    %v226 = vunpack.c.h.b16 %v159
    %v227 = vunpack.c.l.b16 %v160
    %v228 = vunpack.c.h.b16 %v160
    %v229 = vunpack.c.l.b16 %v161
    %v230 = vunpack.c.h.b16 %v161
    %v231 = vunpack.c.l.b16 %v162
    %v232 = vunpack.c.h.b16 %v162
    %v233 = vunpack.c.l.b16 %v163
    %v234 = vunpack.c.h.b16 %v163
    %v235 = vunpack.c.l.b16 %v164
    %v236 = vunpack.c.h.b16 %v164
    %v237 = vunpack.c.l.b16 %v165
    %v238 = vunpack.c.h.b16 %v165
    %v239 = vunpack.c.l.b16 %v166
    %v240 = vunpack.c.h.b16 %v166
    %v241 = vunpack.c.l.b16 %v167
    %v242 = vunpack.c.h.b16 %v167
    %v243 = vunpack.c.l.b16 %v168
    %v244 = vunpack.c.h.b16 %v168
    %v245 = vpack.c.b16 %v215, %v213
    %v246 = vpack.c.b16 %v216, %v214
    %v247 = vpack.c.b16 %v219, %v217
    %v248 = vpack.c.b16 %v220, %v218
    %v249 = vpack.c.b16 %v223, %v221
    %v250 = vpack.c.b16 %v224, %v222
    %v251 = vpack.c.b16 %v227, %v225
    %v252 = vpack.c.b16 %v228, %v226
    %v253 = vpack.c.b16 %v231, %v229
    %v254 = vpack.c.b16 %v232, %v230
    %v255 = vpack.c.b16 %v235, %v233
    %v256 = vpack.c.b16 %v236, %v234
    %v257 = vpack.c.b16 %v239, %v237
    %v258 = vpack.c.b16 %v240, %v238
    %v259 = vpack.c.b16 %v243, %v241
    %v260 = vpack.c.b16 %v244, %v242
    %277 = vmatprep.subr.bf16.mxu0 %v246
    %278 = vmatpush1.bf16.msra.mxu0 %v245
    %279 = vmatprep.subr.bf16.mxu0 %v248
    %280 = vmatpush1.bf16.msra.mxu0 %v247
    %281 = vmatprep.subr.bf16.mxu0 %v250
    %282 = vmatpush1.bf16.msra.mxu0 %v249
    %283 = vmatprep.subr.bf16.mxu0 %v252
    %284 = vmatpush1.bf16.msra.mxu0 %v251
    %285 = vmatprep.subr.bf16.mxu0 %v254
    %286 = vmatpush1.bf16.msra.mxu0 %v253
    %287 = vmatprep.subr.bf16.mxu0 %v256
    %288 = vmatpush1.bf16.msra.mxu0 %v255
    %289 = vmatprep.subr.bf16.mxu0 %v258
    %290 = vmatpush1.bf16.msra.mxu0 %v257
    %291 = vmatprep.subr.bf16.mxu0 %v260
    %292 = vmatpush1.bf16.msra.mxu0 %v259
    %293 = vmatprep.subr.bf16.mxu0 0
    %294 = vmatpush1.bf16.msra.mxu0 0
    %295 = vmatprep.subr.bf16.mxu0 0
    %296 = vmatpush1.bf16.msra.mxu0 0
    %297 = vmatprep.subr.bf16.mxu0 0
    %298 = vmatpush1.bf16.msra.mxu0 0
    %299 = vmatprep.subr.bf16.mxu0 0
    %300 = vmatpush1.bf16.msra.mxu0 0
    %301 = vmatprep.subr.bf16.mxu0 0
    %302 = vmatpush1.bf16.msra.mxu0 0
    %303 = vmatprep.subr.bf16.mxu0 0
    %304 = vmatpush1.bf16.msra.mxu0 0
    %305 = vmatprep.subr.bf16.mxu0 0
    %306 = vmatpush1.bf16.msra.mxu0 0
    %307 = vmatprep.subr.bf16.mxu0 0
    %308 = vmatpush1.bf16.msra.mxu0 0
    %309 = vmatprep.mubr.bf16.mxu0 0
    %310 = vmatmul.mubr.bf16.gmra.mrb[0].mxu0 %v191
    %v311 = vpop.f32.mrb[0].mxu0
    %v312 = vadd.f32 %v174, %v311
    %v313 = vpop.f32.mrb[0].mxu0
    %v314 = vadd.f32 %v178, %v313
    %v315 = vpop.f32.mrb[0].mxu0
    %v316 = vadd.f32 %v174, %v315
    %v317 = vpop.f32.mrb[0].mxu0
    %v318 = vadd.f32 %v178, %v317
    %319 = vmatprep.mubr.bf16.mxu0 0
    %320 = vmatmul.mubr.bf16.gmra.mrb[0].mxu0 %v192
    %v321 = vpop.f32.mrb[0].mxu0
    %v322 = vadd.f32 %v174, %v321
    %v323 = vpop.f32.mrb[0].mxu0
    %v324 = vadd.f32 %v178, %v323
    %v325 = vpop.f32.mrb[0].mxu0
    %v326 = vadd.f32 %v174, %v325
    %v327 = vpop.f32.mrb[0].mxu0
    %v328 = vadd.f32 %v178, %v327
    %329 = vmatprep.mubr.bf16.mxu0 0
    %330 = vmatmul.mubr.bf16.gmra.mrb[0].mxu0 %v193
    %v331 = vpop.f32.mrb[0].mxu0
    %v332 = vadd.f32 %v174, %v331
    %v333 = vpop.f32.mrb[0].mxu0
    %v334 = vadd.f32 %v178, %v333
    %v335 = vpop.f32.mrb[0].mxu0
    %v336 = vpop.f32.mrb[0].mxu0
    %337 = vdwg.mxu0
    %v338 = vmax.f32 %v312, 0.0
    %v339 = vmax.f32 %v314, 0.0
    %v340 = vmax.f32 %v316, 0.0
    %v341 = vmax.f32 %v318, 0.0
    %v342 = vmax.f32 %v322, 0.0
    %v343 = vmax.f32 %v324, 0.0
    %v344 = vmax.f32 %v326, 0.0
    %v345 = vmax.f32 %v328, 0.0
    %v346 = vmax.f32 %v332, 0.0
    %v347 = vmax.f32 %v334, 0.0
    %v348 = vpack.c.bf16 %v340, %v338
    %v349 = vpack.c.bf16 %v341, %v339
    %v350 = vpack.c.bf16 %v344, %v342
    %v351 = vpack.c.bf16 %v345, %v343
    %v352 = vpack.c.bf16 %v346, %v346
    %v353 = vpack.c.bf16 %v347, %v347
    %v354 = vld [vmem:[#allocation8] sm:$0xff]
    %v355 = vld [vmem:[#allocation8 + $0x8] sm:$0xff]
    %v356 = vld [vmem:[#allocation8 + $0x10] sm:$0xff]
    %v357 = vld [vmem:[#allocation8 + $0x18] sm:$0xff]
    %v358 = vld [vmem:[#allocation8 + $0x20] sm:$0xff]
    %v359 = vld [vmem:[#allocation8 + $0x28] sm:$0xff]
    %v360 = vld [vmem:[#allocation8 + $0x30] sm:$0xff]
    %v361 = vld [vmem:[#allocation8 + $0x38] sm:$0xff]
    %v362 = vld [vmem:[#allocation8 + $0x40] sm:$0xff]
    %v363 = vld [vmem:[#allocation8 + $0x48] sm:$0xff]
    %v364 = vld [vmem:[#allocation8 + $0x50] sm:$0xff]
    %v365 = vld [vmem:[#allocation8 + $0x58] sm:$0xff]
    %v366 = vld [vmem:[#allocation8 + $0x60] sm:$0xff]
    %v367 = vld [vmem:[#allocation8 + $0x68] sm:$0xff]
    %v368 = vld [vmem:[#allocation8 + $0x70] sm:$0xff]
    %v369 = vld [vmem:[#allocation8 + $0x78] sm:$0xff]
    %v370 = vld [vmem:[#allocation8 + $0x80] sm:$0xff]
    %v371 = vld [vmem:[#allocation8 + $0x88] sm:$0xff]
    %v372 = vld [vmem:[#allocation8 + $0x90] sm:$0xff]
    %v373 = vld [vmem:[#allocation8 + $0x98] sm:$0xff]
    %v374 = vld [vmem:[#allocation8 + $0xa0] sm:$0xff]
    %v375 = vld [vmem:[#allocation8 + $0xa8] sm:$0xff]
    %v376 = vld [vmem:[#allocation8 + $0xb0] sm:$0xff]
    %v377 = vld [vmem:[#allocation8 + $0xb8] sm:$0xff]
    %v378 = vld [vmem:[#allocation8 + $0xc0] sm:$0xff]
    %v379 = vld [vmem:[#allocation8 + $0xc8] sm:$0xff]
    %v380 = vld [vmem:[#allocation8 + $0xd0] sm:$0xff]
    %v381 = vld [vmem:[#allocation8 + $0xd8] sm:$0xff]
    %v382 = vld [vmem:[#allocation8 + $0xe0] sm:$0xff]
    %v383 = vld [vmem:[#allocation8 + $0xe8] sm:$0xff]
    %v384 = vld [vmem:[#allocation8 + $0xf0] sm:$0xff]
    %v385 = vld [vmem:[#allocation8 + $0xf8] sm:$0xff]
    %v386 = vld [vmem:[#allocation10] sm:$0x3]
    %v388 = vlaneseq
    %v389 = vshrl.u32 %v388, 7
    %v390 = vsub.s32 0, %v389
    %v391 = vrot.slane %v386, %v390
    %v392 = vlaneseq
    %v393 = vshrl.u32 %v392, 7
    %v394 = vsub.s32 1, %v393
    %v395 = vrot.slane %v386, %v394
    %v430 = vunpack.c.l.b16 %v354
    %v431 = vunpack.c.h.b16 %v354
    %v432 = vunpack.c.l.b16 %v355
    %v433 = vunpack.c.h.b16 %v355
    %v434 = vunpack.c.l.b16 %v356
    %v435 = vunpack.c.h.b16 %v356
    %v436 = vunpack.c.l.b16 %v357
    %v437 = vunpack.c.h.b16 %v357
    %v438 = vunpack.c.l.b16 %v358
    %v439 = vunpack.c.h.b16 %v358
    %v440 = vunpack.c.l.b16 %v359
    %v441 = vunpack.c.h.b16 %v359
    %v442 = vunpack.c.l.b16 %v360
    %v443 = vunpack.c.h.b16 %v360
    %v444 = vunpack.c.l.b16 %v361
    %v445 = vunpack.c.h.b16 %v361
    %v446 = vunpack.c.l.b16 %v362
    %v447 = vunpack.c.h.b16 %v362
    %v448 = vunpack.c.l.b16 %v363
    %v449 = vunpack.c.h.b16 %v363
    %v450 = vunpack.c.l.b16 %v364
    %v451 = vunpack.c.h.b16 %v364
    %v452 = vunpack.c.l.b16 %v365
    %v453 = vunpack.c.h.b16 %v365
    %v454 = vunpack.c.l.b16 %v366
    %v455 = vunpack.c.h.b16 %v366
    %v456 = vunpack.c.l.b16 %v367
    %v457 = vunpack.c.h.b16 %v367
    %v458 = vunpack.c.l.b16 %v368
    %v459 = vunpack.c.h.b16 %v368
    %v460 = vunpack.c.l.b16 %v369
    %v461 = vunpack.c.h.b16 %v369
    %v462 = vunpack.c.l.b16 %v370
    %v463 = vunpack.c.h.b16 %v370
    %v464 = vunpack.c.l.b16 %v371
    %v465 = vunpack.c.h.b16 %v371
    %v466 = vunpack.c.l.b16 %v372
    %v467 = vunpack.c.h.b16 %v372
    %v468 = vunpack.c.l.b16 %v373
    %v469 = vunpack.c.h.b16 %v373
    %v470 = vunpack.c.l.b16 %v374
    %v471 = vunpack.c.h.b16 %v374
    %v472 = vunpack.c.l.b16 %v375
    %v473 = vunpack.c.h.b16 %v375
    %v474 = vunpack.c.l.b16 %v376
    %v475 = vunpack.c.h.b16 %v376
    %v476 = vunpack.c.l.b16 %v377
    %v477 = vunpack.c.h.b16 %v377
    %v478 = vunpack.c.l.b16 %v378
    %v479 = vunpack.c.h.b16 %v378
    %v480 = vunpack.c.l.b16 %v379
    %v481 = vunpack.c.h.b16 %v379
    %v482 = vunpack.c.l.b16 %v380
    %v483 = vunpack.c.h.b16 %v380
    %v484 = vunpack.c.l.b16 %v381
    %v485 = vunpack.c.h.b16 %v381
    %v486 = vunpack.c.l.b16 %v382
    %v487 = vunpack.c.h.b16 %v382
    %v488 = vunpack.c.l.b16 %v383
    %v489 = vunpack.c.h.b16 %v383
    %v490 = vunpack.c.l.b16 %v384
    %v491 = vunpack.c.h.b16 %v384
    %v492 = vunpack.c.l.b16 %v385
    %v493 = vunpack.c.h.b16 %v385
    %v494 = vpack.c.b16 %v432, %v430
    %v495 = vpack.c.b16 %v433, %v431
    %v496 = vpack.c.b16 %v436, %v434
    %v497 = vpack.c.b16 %v437, %v435
    %v498 = vpack.c.b16 %v440, %v438
    %v499 = vpack.c.b16 %v441, %v439
    %v500 = vpack.c.b16 %v444, %v442
    %v501 = vpack.c.b16 %v445, %v443
    %v502 = vpack.c.b16 %v448, %v446
    %v503 = vpack.c.b16 %v449, %v447
    %v504 = vpack.c.b16 %v452, %v450
    %v505 = vpack.c.b16 %v453, %v451
    %v506 = vpack.c.b16 %v456, %v454
    %v507 = vpack.c.b16 %v457, %v455
    %v508 = vpack.c.b16 %v460, %v458
    %v509 = vpack.c.b16 %v461, %v459
    %v510 = vpack.c.b16 %v464, %v462
    %v511 = vpack.c.b16 %v465, %v463
    %v512 = vpack.c.b16 %v468, %v466
    %v513 = vpack.c.b16 %v469, %v467
    %v514 = vpack.c.b16 %v472, %v470
    %v515 = vpack.c.b16 %v473, %v471
    %v516 = vpack.c.b16 %v476, %v474
    %v517 = vpack.c.b16 %v477, %v475
    %v518 = vpack.c.b16 %v480, %v478
    %v519 = vpack.c.b16 %v481, %v479
    %v520 = vpack.c.b16 %v484, %v482
    %v521 = vpack.c.b16 %v485, %v483
    %v522 = vpack.c.b16 %v488, %v486
    %v523 = vpack.c.b16 %v489, %v487
    %v524 = vpack.c.b16 %v492, %v490
    %v525 = vpack.c.b16 %v493, %v491
    %558 = vmatprep.subr.bf16.mxu0 %v495
    %559 = vmatpush1.bf16.msra.mxu0 %v494
    %560 = vmatprep.subr.bf16.mxu0 %v497
    %561 = vmatpush1.bf16.msra.mxu0 %v496
    %562 = vmatprep.subr.bf16.mxu0 %v499
    %563 = vmatpush1.bf16.msra.mxu0 %v498
    %564 = vmatprep.subr.bf16.mxu0 %v501
    %565 = vmatpush1.bf16.msra.mxu0 %v500
    %566 = vmatprep.subr.bf16.mxu0 %v503
    %567 = vmatpush1.bf16.msra.mxu0 %v502
    %568 = vmatprep.subr.bf16.mxu0 %v505
    %569 = vmatpush1.bf16.msra.mxu0 %v504
    %570 = vmatprep.subr.bf16.mxu0 %v507
    %571 = vmatpush1.bf16.msra.mxu0 %v506
    %572 = vmatprep.subr.bf16.mxu0 %v509
    %573 = vmatpush1.bf16.msra.mxu0 %v508
    %574 = vmatprep.subr.bf16.mxu0 %v511
    %575 = vmatpush1.bf16.msra.mxu0 %v510
    %576 = vmatprep.subr.bf16.mxu0 %v513
    %577 = vmatpush1.bf16.msra.mxu0 %v512
    %578 = vmatprep.subr.bf16.mxu0 %v515
    %579 = vmatpush1.bf16.msra.mxu0 %v514
    %580 = vmatprep.subr.bf16.mxu0 %v517
    %581 = vmatpush1.bf16.msra.mxu0 %v516
    %582 = vmatprep.subr.bf16.mxu0 %v519
    %583 = vmatpush1.bf16.msra.mxu0 %v518
    %584 = vmatprep.subr.bf16.mxu0 %v521
    %585 = vmatpush1.bf16.msra.mxu0 %v520
    %586 = vmatprep.subr.bf16.mxu0 %v523
    %587 = vmatpush1.bf16.msra.mxu0 %v522
    %588 = vmatprep.subr.bf16.mxu0 %v525
    %589 = vmatpush1.bf16.msra.mxu0 %v524
    %590 = vmatprep.mubr.bf16.mxu0 %v349
    %591 = vmatmul.mubr.bf16.gmra.mrb[0].mxu0 %v348
    %v592 = vpop.f32.mrb[0].mxu0
    %v593 = vadd.f32 %v391, %v592
    %v594 = vpop.f32.mrb[0].mxu0
    %v595 = vadd.f32 %v395, %v594
    %v596 = vpop.f32.mrb[0].mxu0
    %v597 = vadd.f32 %v391, %v596
    %v598 = vpop.f32.mrb[0].mxu0
    %v599 = vadd.f32 %v395, %v598
    %600 = vmatprep.mubr.bf16.mxu0 %v351
    %601 = vmatmul.mubr.bf16.gmra.mrb[0].mxu0 %v350
    %v602 = vpop.f32.mrb[0].mxu0
    %v603 = vadd.f32 %v391, %v602
    %v604 = vpop.f32.mrb[0].mxu0
    %v605 = vadd.f32 %v395, %v604
    %v606 = vpop.f32.mrb[0].mxu0
    %v607 = vadd.f32 %v391, %v606
    %v608 = vpop.f32.mrb[0].mxu0
    %v609 = vadd.f32 %v395, %v608
    %610 = vmatprep.mubr.bf16.mxu0 %v353
    %611 = vmatmul.mubr.bf16.gmra.mrb[0].mxu0 %v352
    %v612 = vpop.f32.mrb[0].mxu0
    %v613 = vadd.f32 %v391, %v612
    %v614 = vpop.f32.mrb[0].mxu0
    %v615 = vadd.f32 %v395, %v614
    %v616 = vpop.f32.mrb[0].mxu0
    %v617 = vpop.f32.mrb[0].mxu0
    %618 = vdwg.mxu0
    %v619 = vmax.f32 %v593, 0.0
    %v620 = vmax.f32 %v595, 0.0
    %v621 = vmax.f32 %v597, 0.0
    %v622 = vmax.f32 %v599, 0.0
    %v623 = vmax.f32 %v603, 0.0
    %v624 = vmax.f32 %v605, 0.0
    %v625 = vmax.f32 %v607, 0.0
    %v626 = vmax.f32 %v609, 0.0
    %v627 = vmax.f32 %v613, 0.0
    %v628 = vmax.f32 %v615, 0.0
    %v629 = vpack.c.bf16 %v621, %v619
    %v630 = vpack.c.bf16 %v622, %v620
    %v631 = vpack.c.bf16 %v625, %v623
    %v632 = vpack.c.bf16 %v626, %v624
    %v633 = vpack.c.bf16 %v627, %v627
    %v634 = vpack.c.bf16 %v628, %v628
    %v635 = vld [vmem:[#allocation11] sm:$0xff]
    %v636 = vld [vmem:[#allocation11 + $0x8] sm:$0xff]
    %v637 = vld [vmem:[#allocation11 + $0x10] sm:$0xff]
    %v638 = vld [vmem:[#allocation11 + $0x18] sm:$0xff]
    %v639 = vld [vmem:[#allocation11 + $0x20] sm:$0xff]
    %v640 = vld [vmem:[#allocation11 + $0x28] sm:$0xff]
    %v641 = vld [vmem:[#allocation11 + $0x30] sm:$0xff]
    %v642 = vld [vmem:[#allocation11 + $0x38] sm:$0xff]
    %v643 = vld [vmem:[#allocation11 + $0x40] sm:$0xff]
    %v644 = vld [vmem:[#allocation11 + $0x48] sm:$0xff]
    %v645 = vld [vmem:[#allocation11 + $0x50] sm:$0xff]
    %v646 = vld [vmem:[#allocation11 + $0x58] sm:$0xff]
    %v647 = vld [vmem:[#allocation11 + $0x60] sm:$0xff]
    %v648 = vld [vmem:[#allocation11 + $0x68] sm:$0xff]
    %v649 = vld [vmem:[#allocation11 + $0x70] sm:$0xff]
    %v650 = vld [vmem:[#allocation11 + $0x78] sm:$0xff]
    %v651 = vld [vmem:[#allocation11 + $0x80] sm:$0xff]
    %v652 = vld [vmem:[#allocation11 + $0x88] sm:$0xff]
    %v653 = vld [vmem:[#allocation11 + $0x90] sm:$0xff]
    %v654 = vld [vmem:[#allocation11 + $0x98] sm:$0xff]
    %v655 = vld [vmem:[#allocation11 + $0xa0] sm:$0xff]
    %v656 = vld [vmem:[#allocation11 + $0xa8] sm:$0xff]
    %v657 = vld [vmem:[#allocation11 + $0xb0] sm:$0xff]
    %v658 = vld [vmem:[#allocation11 + $0xb8] sm:$0xff]
    %v659 = vld [vmem:[#allocation11 + $0xc0] sm:$0xff]
    %v660 = vld [vmem:[#allocation11 + $0xc8] sm:$0xff]
    %v661 = vld [vmem:[#allocation11 + $0xd0] sm:$0xff]
    %v662 = vld [vmem:[#allocation11 + $0xd8] sm:$0xff]
    %v663 = vld [vmem:[#allocation11 + $0xe0] sm:$0xff]
    %v664 = vld [vmem:[#allocation11 + $0xe8] sm:$0xff]
    %v665 = vld [vmem:[#allocation11 + $0xf0] sm:$0xff]
    %v666 = vld [vmem:[#allocation11 + $0xf8] sm:$0xff]
    %v667 = vld [vmem:[#allocation13] sm:$0x3]
    %v669 = vlaneseq
    %v670 = vshrl.u32 %v669, 7
    %v671 = vsub.s32 0, %v670
    %v672 = vrot.slane %v667, %v671
    %v673 = vlaneseq
    %v674 = vshrl.u32 %v673, 7
    %v675 = vsub.s32 1, %v674
    %v676 = vrot.slane %v667, %v675
    %v711 = vunpack.c.l.b16 %v635
    %v712 = vunpack.c.h.b16 %v635
    %v713 = vunpack.c.l.b16 %v636
    %v714 = vunpack.c.h.b16 %v636
    %v715 = vunpack.c.l.b16 %v637
    %v716 = vunpack.c.h.b16 %v637
    %v717 = vunpack.c.l.b16 %v638
    %v718 = vunpack.c.h.b16 %v638
    %v719 = vunpack.c.l.b16 %v639
    %v720 = vunpack.c.h.b16 %v639
    %v721 = vunpack.c.l.b16 %v640
    %v722 = vunpack.c.h.b16 %v640
    %v723 = vunpack.c.l.b16 %v641
    %v724 = vunpack.c.h.b16 %v641
    %v725 = vunpack.c.l.b16 %v642
    %v726 = vunpack.c.h.b16 %v642
    %v727 = vunpack.c.l.b16 %v643
    %v728 = vunpack.c.h.b16 %v643
    %v729 = vunpack.c.l.b16 %v644
    %v730 = vunpack.c.h.b16 %v644
    %v731 = vunpack.c.l.b16 %v645
    %v732 = vunpack.c.h.b16 %v645
    %v733 = vunpack.c.l.b16 %v646
    %v734 = vunpack.c.h.b16 %v646
    %v735 = vunpack.c.l.b16 %v647
    %v736 = vunpack.c.h.b16 %v647
    %v737 = vunpack.c.l.b16 %v648
    %v738 = vunpack.c.h.b16 %v648
    %v739 = vunpack.c.l.b16 %v649
    %v740 = vunpack.c.h.b16 %v649
    %v741 = vunpack.c.l.b16 %v650
    %v742 = vunpack.c.h.b16 %v650
    %v743 = vunpack.c.l.b16 %v651
    %v744 = vunpack.c.h.b16 %v651
    %v745 = vunpack.c.l.b16 %v652
    %v746 = vunpack.c.h.b16 %v652
    %v747 = vunpack.c.l.b16 %v653
    %v748 = vunpack.c.h.b16 %v653
    %v749 = vunpack.c.l.b16 %v654
    %v750 = vunpack.c.h.b16 %v654
    %v751 = vunpack.c.l.b16 %v655
    %v752 = vunpack.c.h.b16 %v655
    %v753 = vunpack.c.l.b16 %v656
    %v754 = vunpack.c.h.b16 %v656
    %v755 = vunpack.c.l.b16 %v657
    %v756 = vunpack.c.h.b16 %v657
    %v757 = vunpack.c.l.b16 %v658
    %v758 = vunpack.c.h.b16 %v658
    %v759 = vunpack.c.l.b16 %v659
    %v760 = vunpack.c.h.b16 %v659
    %v761 = vunpack.c.l.b16 %v660
    %v762 = vunpack.c.h.b16 %v660
    %v763 = vunpack.c.l.b16 %v661
    %v764 = vunpack.c.h.b16 %v661
    %v765 = vunpack.c.l.b16 %v662
    %v766 = vunpack.c.h.b16 %v662
    %v767 = vunpack.c.l.b16 %v663
    %v768 = vunpack.c.h.b16 %v663
    %v769 = vunpack.c.l.b16 %v664
    %v770 = vunpack.c.h.b16 %v664
    %v771 = vunpack.c.l.b16 %v665
    %v772 = vunpack.c.h.b16 %v665
    %v773 = vunpack.c.l.b16 %v666
    %v774 = vunpack.c.h.b16 %v666
    %v775 = vpack.c.b16 %v713, %v711
    %v776 = vpack.c.b16 %v714, %v712
    %v777 = vpack.c.b16 %v717, %v715
    %v778 = vpack.c.b16 %v718, %v716
    %v779 = vpack.c.b16 %v721, %v719
    %v780 = vpack.c.b16 %v722, %v720
    %v781 = vpack.c.b16 %v725, %v723
    %v782 = vpack.c.b16 %v726, %v724
    %v783 = vpack.c.b16 %v729, %v727
    %v784 = vpack.c.b16 %v730, %v728
    %v785 = vpack.c.b16 %v733, %v731
    %v786 = vpack.c.b16 %v734, %v732
    %v787 = vpack.c.b16 %v737, %v735
    %v788 = vpack.c.b16 %v738, %v736
    %v789 = vpack.c.b16 %v741, %v739
    %v790 = vpack.c.b16 %v742, %v740
    %v791 = vpack.c.b16 %v745, %v743
    %v792 = vpack.c.b16 %v746, %v744
    %v793 = vpack.c.b16 %v749, %v747
    %v794 = vpack.c.b16 %v750, %v748
    %v795 = vpack.c.b16 %v753, %v751
    %v796 = vpack.c.b16 %v754, %v752
    %v797 = vpack.c.b16 %v757, %v755
    %v798 = vpack.c.b16 %v758, %v756
    %v799 = vpack.c.b16 %v761, %v759
    %v800 = vpack.c.b16 %v762, %v760
    %v801 = vpack.c.b16 %v765, %v763
    %v802 = vpack.c.b16 %v766, %v764
    %v803 = vpack.c.b16 %v769, %v767
    %v804 = vpack.c.b16 %v770, %v768
    %v805 = vpack.c.b16 %v773, %v771
    %v806 = vpack.c.b16 %v774, %v772
    %839 = vmatprep.subr.bf16.mxu0 %v776
    %840 = vmatpush1.bf16.msra.mxu0 %v775
    %841 = vmatprep.subr.bf16.mxu0 %v778
    %842 = vmatpush1.bf16.msra.mxu0 %v777
    %843 = vmatprep.subr.bf16.mxu0 %v780
    %844 = vmatpush1.bf16.msra.mxu0 %v779
    %845 = vmatprep.subr.bf16.mxu0 %v782
    %846 = vmatpush1.bf16.msra.mxu0 %v781
    %847 = vmatprep.subr.bf16.mxu0 %v784
    %848 = vmatpush1.bf16.msra.mxu0 %v783
    %849 = vmatprep.subr.bf16.mxu0 %v786
    %850 = vmatpush1.bf16.msra.mxu0 %v785
    %851 = vmatprep.subr.bf16.mxu0 %v788
    %852 = vmatpush1.bf16.msra.mxu0 %v787
    %853 = vmatprep.subr.bf16.mxu0 %v790
    %854 = vmatpush1.bf16.msra.mxu0 %v789
    %855 = vmatprep.subr.bf16.mxu0 %v792
    %856 = vmatpush1.bf16.msra.mxu0 %v791
    %857 = vmatprep.subr.bf16.mxu0 %v794
    %858 = vmatpush1.bf16.msra.mxu0 %v793
    %859 = vmatprep.subr.bf16.mxu0 %v796
    %860 = vmatpush1.bf16.msra.mxu0 %v795
    %861 = vmatprep.subr.bf16.mxu0 %v798
    %862 = vmatpush1.bf16.msra.mxu0 %v797
    %863 = vmatprep.subr.bf16.mxu0 %v800
    %864 = vmatpush1.bf16.msra.mxu0 %v799
    %865 = vmatprep.subr.bf16.mxu0 %v802
    %866 = vmatpush1.bf16.msra.mxu0 %v801
    %867 = vmatprep.subr.bf16.mxu0 %v804
    %868 = vmatpush1.bf16.msra.mxu0 %v803
    %869 = vmatprep.subr.bf16.mxu0 %v806
    %870 = vmatpush1.bf16.msra.mxu0 %v805
    %871 = vmatprep.mubr.bf16.mxu0 %v630
    %872 = vmatmul.mubr.bf16.gmra.mrb[0].mxu0 %v629
    %v873 = vpop.f32.mrb[0].mxu0
    %v874 = vadd.f32 %v672, %v873
    %v875 = vpop.f32.mrb[0].mxu0
    %v876 = vadd.f32 %v676, %v875
    %v877 = vpop.f32.mrb[0].mxu0
    %v878 = vadd.f32 %v672, %v877
    %v879 = vpop.f32.mrb[0].mxu0
    %v880 = vadd.f32 %v676, %v879
    %881 = vmatprep.mubr.bf16.mxu0 %v632
    %882 = vmatmul.mubr.bf16.gmra.mrb[0].mxu0 %v631
    %v883 = vpop.f32.mrb[0].mxu0
    %v884 = vadd.f32 %v672, %v883
    %v885 = vpop.f32.mrb[0].mxu0
    %v886 = vadd.f32 %v676, %v885
    %v887 = vpop.f32.mrb[0].mxu0
    %v888 = vadd.f32 %v672, %v887
    %v889 = vpop.f32.mrb[0].mxu0
    %v890 = vadd.f32 %v676, %v889
    %891 = vmatprep.mubr.bf16.mxu0 %v634
    %892 = vmatmul.mubr.bf16.gmra.mrb[0].mxu0 %v633
    %v893 = vpop.f32.mrb[0].mxu0
    %v894 = vadd.f32 %v672, %v893
    %v895 = vpop.f32.mrb[0].mxu0
    %v896 = vadd.f32 %v676, %v895
    %v897 = vpop.f32.mrb[0].mxu0
    %v898 = vpop.f32.mrb[0].mxu0
    %899 = vdwg.mxu0
    %v900 = vmax.f32 %v874, 0.0
    %v901 = vmax.f32 %v876, 0.0
    %v902 = vmax.f32 %v878, 0.0
    %v903 = vmax.f32 %v880, 0.0
    %v904 = vmax.f32 %v884, 0.0
    %v905 = vmax.f32 %v886, 0.0
    %v906 = vmax.f32 %v888, 0.0
    %v907 = vmax.f32 %v890, 0.0
    %v908 = vmax.f32 %v894, 0.0
    %v909 = vmax.f32 %v896, 0.0
    %v910 = vpack.c.bf16 %v902, %v900
    %v911 = vpack.c.bf16 %v903, %v901
    %v912 = vpack.c.bf16 %v906, %v904
    %v913 = vpack.c.bf16 %v907, %v905
    %v914 = vpack.c.bf16 %v908, %v908
    %v915 = vpack.c.bf16 %v909, %v909
    %v916 = vld [vmem:[#allocation14] sm:$0xff]
    %v917 = vld [vmem:[#allocation14 + $0x8] sm:$0xf]
    %v918 = vld [vmem:[#allocation14 + $0xc] sm:$0xff]
    %v919 = vld [vmem:[#allocation14 + $0x14] sm:$0xf]
    %v920 = vld [vmem:[#allocation14 + $0x18] sm:$0xff]
    %v921 = vld [vmem:[#allocation14 + $0x20] sm:$0xf]
    %v922 = vld [vmem:[#allocation14 + $0x24] sm:$0xff]
    %v923 = vld [vmem:[#allocation14 + $0x2c] sm:$0xf]
    %v924 = vld [vmem:[#allocation14 + $0x30] sm:$0xff]
    %v925 = vld [vmem:[#allocation14 + $0x38] sm:$0xf]
    %v926 = vld [vmem:[#allocation14 + $0x3c] sm:$0xff]
    %v927 = vld [vmem:[#allocation14 + $0x44] sm:$0xf]
    %v928 = vld [vmem:[#allocation14 + $0x48] sm:$0xff]
    %v929 = vld [vmem:[#allocation14 + $0x50] sm:$0xf]
    %v930 = vld [vmem:[#allocation14 + $0x54] sm:$0xff]
    %v931 = vld [vmem:[#allocation14 + $0x5c] sm:$0xf]
    %v932 = vld [vmem:[#allocation14 + $0x60] sm:$0xff]
    %v933 = vld [vmem:[#allocation14 + $0x68] sm:$0xf]
    %v934 = vld [vmem:[#allocation14 + $0x6c] sm:$0xff]
    %v935 = vld [vmem:[#allocation14 + $0x74] sm:$0xf]
    %v936 = vld [vmem:[#allocation14 + $0x78] sm:$0xff]
    %v937 = vld [vmem:[#allocation14 + $0x80] sm:$0xf]
    %v938 = vld [vmem:[#allocation14 + $0x84] sm:$0xff]
    %v939 = vld [vmem:[#allocation14 + $0x8c] sm:$0xf]
    %v940 = vld [vmem:[#allocation14 + $0x90] sm:$0xff]
    %v941 = vld [vmem:[#allocation14 + $0x98] sm:$0xf]
    %v942 = vld [vmem:[#allocation14 + $0x9c] sm:$0xff]
    %v943 = vld [vmem:[#allocation14 + $0xa4] sm:$0xf]
    %v944 = vld [vmem:[#allocation14 + $0xa8] sm:$0xff]
    %v945 = vld [vmem:[#allocation14 + $0xb0] sm:$0xf]
    %v946 = vld [vmem:[#allocation14 + $0xb4] sm:$0xff]
    %v947 = vld [vmem:[#allocation14 + $0xbc] sm:$0xf]
    %v948 = vld [vmem:[#allocation14 + $0xc0] sm:$0xff]
    %v949 = vld [vmem:[#allocation14 + $0xc8] sm:$0xf]
    %v950 = vld [vmem:[#allocation14 + $0xcc] sm:$0xff]
    %v951 = vld [vmem:[#allocation14 + $0xd4] sm:$0xf]
    %v952 = vld [vmem:[#allocation14 + $0xd8] sm:$0xff]
    %v953 = vld [vmem:[#allocation14 + $0xe0] sm:$0xf]
    %v954 = vld [vmem:[#allocation14 + $0xe4] sm:$0xff]
    %v955 = vld [vmem:[#allocation14 + $0xec] sm:$0xf]
    %v956 = vld [vmem:[#allocation14 + $0xf0] sm:$0xff]
    %v957 = vld [vmem:[#allocation14 + $0xf8] sm:$0xf]
    %v958 = vld [vmem:[#allocation14 + $0xfc] sm:$0xff]
    %v959 = vld [vmem:[#allocation14 + $0x104] sm:$0xf]
    %v960 = vld [vmem:[#allocation14 + $0x108] sm:$0xff]
    %v961 = vld [vmem:[#allocation14 + $0x110] sm:$0xf]
    %v962 = vld [vmem:[#allocation14 + $0x114] sm:$0xff]
    %v963 = vld [vmem:[#allocation14 + $0x11c] sm:$0xf]
    %v964 = vld [vmem:[#allocation14 + $0x120] sm:$0xff]
    %v965 = vld [vmem:[#allocation14 + $0x128] sm:$0xf]
    %v966 = vld [vmem:[#allocation14 + $0x12c] sm:$0xff]
    %v967 = vld [vmem:[#allocation14 + $0x134] sm:$0xf]
    %v968 = vld [vmem:[#allocation14 + $0x138] sm:$0xff]
    %v969 = vld [vmem:[#allocation14 + $0x140] sm:$0xf]
    %v970 = vld [vmem:[#allocation14 + $0x144] sm:$0xff]
    %v971 = vld [vmem:[#allocation14 + $0x14c] sm:$0xf]
    %v972 = vld [vmem:[#allocation14 + $0x150] sm:$0xff]
    %v973 = vld [vmem:[#allocation14 + $0x158] sm:$0xf]
    %v974 = vld [vmem:[#allocation14 + $0x15c] sm:$0xff]
    %v975 = vld [vmem:[#allocation14 + $0x164] sm:$0xf]
    %v976 = vld [vmem:[#allocation14 + $0x168] sm:$0xff]
    %v977 = vld [vmem:[#allocation14 + $0x170] sm:$0xf]
    %v978 = vld [vmem:[#allocation14 + $0x174] sm:$0xff]
    %v979 = vld [vmem:[#allocation14 + $0x17c] sm:$0xf]
    %v980 = vld [vmem:[#allocation16] sm:$0x7]
    %v982 = vlaneseq
    %v983 = vshrl.u32 %v982, 7
    %v984 = vsub.s32 0, %v983
    %v985 = vrot.slane %v980, %v984
    %v986 = vlaneseq
    %v987 = vshrl.u32 %v986, 7
    %v988 = vsub.s32 1, %v987
    %v989 = vrot.slane %v980, %v988
    %v990 = vlaneseq
    %v991 = vshrl.u32 %v990, 7
    %v992 = vsub.s32 2, %v991
    %v993 = vrot.slane %v980, %v992
    %v1061 = vunpack.c.l.b16 %v916
    %v1062 = vunpack.c.h.b16 %v916
    %v1063 = vunpack.c.l.b16 %v917
    %v1064 = vunpack.c.l.b16 %v918
    %v1065 = vunpack.c.h.b16 %v918
    %v1066 = vunpack.c.l.b16 %v919
    %v1067 = vunpack.c.l.b16 %v920
    %v1068 = vunpack.c.h.b16 %v920
    %v1069 = vunpack.c.l.b16 %v921
    %v1070 = vunpack.c.l.b16 %v922
    %v1071 = vunpack.c.h.b16 %v922
    %v1072 = vunpack.c.l.b16 %v923
    %v1073 = vunpack.c.l.b16 %v924
    %v1074 = vunpack.c.h.b16 %v924
    %v1075 = vunpack.c.l.b16 %v925
    %v1076 = vunpack.c.l.b16 %v926
    %v1077 = vunpack.c.h.b16 %v926
    %v1078 = vunpack.c.l.b16 %v927
    %v1079 = vunpack.c.l.b16 %v928
    %v1080 = vunpack.c.h.b16 %v928
    %v1081 = vunpack.c.l.b16 %v929
    %v1082 = vunpack.c.l.b16 %v930
    %v1083 = vunpack.c.h.b16 %v930
    %v1084 = vunpack.c.l.b16 %v931
    %v1085 = vunpack.c.l.b16 %v932
    %v1086 = vunpack.c.h.b16 %v932
    %v1087 = vunpack.c.l.b16 %v933
    %v1088 = vunpack.c.l.b16 %v934
    %v1089 = vunpack.c.h.b16 %v934
    %v1090 = vunpack.c.l.b16 %v935
    %v1091 = vunpack.c.l.b16 %v936
    %v1092 = vunpack.c.h.b16 %v936
    %v1093 = vunpack.c.l.b16 %v937
    %v1094 = vunpack.c.l.b16 %v938
    %v1095 = vunpack.c.h.b16 %v938
    %v1096 = vunpack.c.l.b16 %v939
    %v1097 = vunpack.c.l.b16 %v940
    %v1098 = vunpack.c.h.b16 %v940
    %v1099 = vunpack.c.l.b16 %v941
    %v1100 = vunpack.c.l.b16 %v942
    %v1101 = vunpack.c.h.b16 %v942
    %v1102 = vunpack.c.l.b16 %v943
    %v1103 = vunpack.c.l.b16 %v944
    %v1104 = vunpack.c.h.b16 %v944
    %v1105 = vunpack.c.l.b16 %v945
    %v1106 = vunpack.c.l.b16 %v946
    %v1107 = vunpack.c.h.b16 %v946
    %v1108 = vunpack.c.l.b16 %v947
    %v1109 = vunpack.c.l.b16 %v948
    %v1110 = vunpack.c.h.b16 %v948
    %v1111 = vunpack.c.l.b16 %v949
    %v1112 = vunpack.c.l.b16 %v950
    %v1113 = vunpack.c.h.b16 %v950
    %v1114 = vunpack.c.l.b16 %v951
    %v1115 = vunpack.c.l.b16 %v952
    %v1116 = vunpack.c.h.b16 %v952
    %v1117 = vunpack.c.l.b16 %v953
    %v1118 = vunpack.c.l.b16 %v954
    %v1119 = vunpack.c.h.b16 %v954
    %v1120 = vunpack.c.l.b16 %v955
    %v1121 = vunpack.c.l.b16 %v956
    %v1122 = vunpack.c.h.b16 %v956
    %v1123 = vunpack.c.l.b16 %v957
    %v1124 = vunpack.c.l.b16 %v958
    %v1125 = vunpack.c.h.b16 %v958
    %v1126 = vunpack.c.l.b16 %v959
    %v1127 = vunpack.c.l.b16 %v960
    %v1128 = vunpack.c.h.b16 %v960
    %v1129 = vunpack.c.l.b16 %v961
    %v1130 = vunpack.c.l.b16 %v962
    %v1131 = vunpack.c.h.b16 %v962
    %v1132 = vunpack.c.l.b16 %v963
    %v1133 = vunpack.c.l.b16 %v964
    %v1134 = vunpack.c.h.b16 %v964
    %v1135 = vunpack.c.l.b16 %v965
    %v1136 = vunpack.c.l.b16 %v966
    %v1137 = vunpack.c.h.b16 %v966
    %v1138 = vunpack.c.l.b16 %v967
    %v1139 = vunpack.c.l.b16 %v968
    %v1140 = vunpack.c.h.b16 %v968
    %v1141 = vunpack.c.l.b16 %v969
    %v1142 = vunpack.c.l.b16 %v970
    %v1143 = vunpack.c.h.b16 %v970
    %v1144 = vunpack.c.l.b16 %v971
    %v1145 = vunpack.c.l.b16 %v972
    %v1146 = vunpack.c.h.b16 %v972
    %v1147 = vunpack.c.l.b16 %v973
    %v1148 = vunpack.c.l.b16 %v974
    %v1149 = vunpack.c.h.b16 %v974
    %v1150 = vunpack.c.l.b16 %v975
    %v1151 = vunpack.c.l.b16 %v976
    %v1152 = vunpack.c.h.b16 %v976
    %v1153 = vunpack.c.l.b16 %v977
    %v1154 = vunpack.c.l.b16 %v978
    %v1155 = vunpack.c.h.b16 %v978
    %v1156 = vunpack.c.l.b16 %v979
    %v1157 = vpack.c.b16 %v1064, %v1061
    %v1158 = vpack.c.b16 %v1065, %v1062
    %v1159 = vpack.c.b16 %v1066, %v1063
    %v1160 = vpack.c.b16 %v1070, %v1067
    %v1161 = vpack.c.b16 %v1071, %v1068
    %v1162 = vpack.c.b16 %v1072, %v1069
    %v1163 = vpack.c.b16 %v1076, %v1073
    %v1164 = vpack.c.b16 %v1077, %v1074
    %v1165 = vpack.c.b16 %v1078, %v1075
    %v1166 = vpack.c.b16 %v1082, %v1079
    %v1167 = vpack.c.b16 %v1083, %v1080
    %v1168 = vpack.c.b16 %v1084, %v1081
    %v1169 = vpack.c.b16 %v1088, %v1085
    %v1170 = vpack.c.b16 %v1089, %v1086
    %v1171 = vpack.c.b16 %v1090, %v1087
    %v1172 = vpack.c.b16 %v1094, %v1091
    %v1173 = vpack.c.b16 %v1095, %v1092
    %v1174 = vpack.c.b16 %v1096, %v1093
    %v1175 = vpack.c.b16 %v1100, %v1097
    %v1176 = vpack.c.b16 %v1101, %v1098
    %v1177 = vpack.c.b16 %v1102, %v1099
    %v1178 = vpack.c.b16 %v1106, %v1103
    %v1179 = vpack.c.b16 %v1107, %v1104
    %v1180 = vpack.c.b16 %v1108, %v1105
    %v1181 = vpack.c.b16 %v1112, %v1109
    %v1182 = vpack.c.b16 %v1113, %v1110
    %v1183 = vpack.c.b16 %v1114, %v1111
    %v1184 = vpack.c.b16 %v1118, %v1115
    %v1185 = vpack.c.b16 %v1119, %v1116
    %v1186 = vpack.c.b16 %v1120, %v1117
    %v1187 = vpack.c.b16 %v1124, %v1121
    %v1188 = vpack.c.b16 %v1125, %v1122
    %v1189 = vpack.c.b16 %v1126, %v1123
    %v1190 = vpack.c.b16 %v1130, %v1127
    %v1191 = vpack.c.b16 %v1131, %v1128
    %v1192 = vpack.c.b16 %v1132, %v1129
    %v1193 = vpack.c.b16 %v1136, %v1133
    %v1194 = vpack.c.b16 %v1137, %v1134
    %v1195 = vpack.c.b16 %v1138, %v1135
    %v1196 = vpack.c.b16 %v1142, %v1139
    %v1197 = vpack.c.b16 %v1143, %v1140
    %v1198 = vpack.c.b16 %v1144, %v1141
    %v1199 = vpack.c.b16 %v1148, %v1145
    %v1200 = vpack.c.b16 %v1149, %v1146
    %v1201 = vpack.c.b16 %v1150, %v1147
    %v1202 = vpack.c.b16 %v1154, %v1151
    %v1203 = vpack.c.b16 %v1155, %v1152
    %v1204 = vpack.c.b16 %v1156, %v1153
    %1253 = vmatprep.subr.bf16.mxu0 %v1158
    %1254 = vmatpush1.bf16.msra.mxu0 %v1157
    %1255 = vmatprep.subr.bf16.mxu0 %v1161
    %1256 = vmatpush1.bf16.msra.mxu0 %v1160
    %1257 = vmatprep.subr.bf16.mxu0 %v1164
    %1258 = vmatpush1.bf16.msra.mxu0 %v1163
    %1259 = vmatprep.subr.bf16.mxu0 %v1167
    %1260 = vmatpush1.bf16.msra.mxu0 %v1166
    %1261 = vmatprep.subr.bf16.mxu0 %v1170
    %1262 = vmatpush1.bf16.msra.mxu0 %v1169
    %1263 = vmatprep.subr.bf16.mxu0 %v1173
    %1264 = vmatpush1.bf16.msra.mxu0 %v1172
    %1265 = vmatprep.subr.bf16.mxu0 %v1176
    %1266 = vmatpush1.bf16.msra.mxu0 %v1175
    %1267 = vmatprep.subr.bf16.mxu0 %v1179
    %1268 = vmatpush1.bf16.msra.mxu0 %v1178
    %1269 = vmatprep.subr.bf16.mxu0 %v1182
    %1270 = vmatpush1.bf16.msra.mxu0 %v1181
    %1271 = vmatprep.subr.bf16.mxu0 %v1185
    %1272 = vmatpush1.bf16.msra.mxu0 %v1184
    %1273 = vmatprep.subr.bf16.mxu0 %v1188
    %1274 = vmatpush1.bf16.msra.mxu0 %v1187
    %1275 = vmatprep.subr.bf16.mxu0 %v1191
    %1276 = vmatpush1.bf16.msra.mxu0 %v1190
    %1277 = vmatprep.subr.bf16.mxu0 %v1194
    %1278 = vmatpush1.bf16.msra.mxu0 %v1193
    %1279 = vmatprep.subr.bf16.mxu0 %v1197
    %1280 = vmatpush1.bf16.msra.mxu0 %v1196
    %1281 = vmatprep.subr.bf16.mxu0 %v1200
    %1282 = vmatpush1.bf16.msra.mxu0 %v1199
    %1283 = vmatprep.subr.bf16.mxu0 %v1203
    %1284 = vmatpush1.bf16.msra.mxu0 %v1202
    %1285 = vmatprep.mubr.bf16.mxu0 %v911
    %1286 = vmatmul.mubr.bf16.gmra.mrb[0].mxu0 %v910
    %v1287 = vpop.f32.mrb[0].mxu0
    %v1288 = vadd.f32 %v985, %v1287
    %v1289 = vpop.f32.mrb[0].mxu0
    %v1290 = vadd.f32 %v989, %v1289
    %v1291 = vpop.f32.mrb[0].mxu0
    %v1292 = vadd.f32 %v985, %v1291
    %v1293 = vpop.f32.mrb[0].mxu0
    %v1294 = vadd.f32 %v989, %v1293
    %1295 = vmatprep.mubr.bf16.mxu0 %v913
    %1296 = vmatmul.mubr.bf16.gmra.mrb[0].mxu0 %v912
    %v1297 = vpop.f32.mrb[0].mxu0
    %v1298 = vadd.f32 %v985, %v1297
    %v1299 = vpop.f32.mrb[0].mxu0
    %v1300 = vadd.f32 %v989, %v1299
    %v1301 = vpop.f32.mrb[0].mxu0
    %v1302 = vadd.f32 %v985, %v1301
    %v1303 = vpop.f32.mrb[0].mxu0
    %v1304 = vadd.f32 %v989, %v1303
    %1305 = vmatprep.mubr.bf16.mxu0 %v915
    %1306 = vmatmul.mubr.bf16.gmra.mrb[0].mxu0 %v914
    %v1307 = vpop.f32.mrb[0].mxu0
    %v1308 = vadd.f32 %v985, %v1307
    %v1309 = vpop.f32.mrb[0].mxu0
    %v1310 = vadd.f32 %v989, %v1309
    %v1311 = vpop.f32.mrb[0].mxu0
    %v1312 = vpop.f32.mrb[0].mxu0
    %1313 = vdwg.mxu0
    %1314 = vmatprep.subr.bf16.mxu0 0
    %1315 = vmatpush1.bf16.msra.mxu0 %v1159
    %1316 = vmatprep.subr.bf16.mxu0 0
    %1317 = vmatpush1.bf16.msra.mxu0 %v1162
    %1318 = vmatprep.subr.bf16.mxu0 0
    %1319 = vmatpush1.bf16.msra.mxu0 %v1165
    %1320 = vmatprep.subr.bf16.mxu0 0
    %1321 = vmatpush1.bf16.msra.mxu0 %v1168
    %1322 = vmatprep.subr.bf16.mxu0 0
    %1323 = vmatpush1.bf16.msra.mxu0 %v1171
    %1324 = vmatprep.subr.bf16.mxu0 0
    %1325 = vmatpush1.bf16.msra.mxu0 %v1174
    %1326 = vmatprep.subr.bf16.mxu0 0
    %1327 = vmatpush1.bf16.msra.mxu0 %v1177
    %1328 = vmatprep.subr.bf16.mxu0 0
    %1329 = vmatpush1.bf16.msra.mxu0 %v1180
    %1330 = vmatprep.subr.bf16.mxu0 0
    %1331 = vmatpush1.bf16.msra.mxu0 %v1183
    %1332 = vmatprep.subr.bf16.mxu0 0
    %1333 = vmatpush1.bf16.msra.mxu0 %v1186
    %1334 = vmatprep.subr.bf16.mxu0 0
    %1335 = vmatpush1.bf16.msra.mxu0 %v1189
    %1336 = vmatprep.subr.bf16.mxu0 0
    %1337 = vmatpush1.bf16.msra.mxu0 %v1192
    %1338 = vmatprep.subr.bf16.mxu0 0
    %1339 = vmatpush1.bf16.msra.mxu0 %v1195
    %1340 = vmatprep.subr.bf16.mxu0 0
    %1341 = vmatpush1.bf16.msra.mxu0 %v1198
    %1342 = vmatprep.subr.bf16.mxu0 0
    %1343 = vmatpush1.bf16.msra.mxu0 %v1201
    %1344 = vmatprep.subr.bf16.mxu0 0
    %1345 = vmatpush1.bf16.msra.mxu0 %v1204
    %1346 = vmatprep.mubr.bf16.mxu0 %v911
    %1347 = vmatmul.mubr.bf16.gmra.mrb[0].mxu0 %v910
    %v1348 = vpop.f32.mrb[0].mxu0
    %v1349 = vadd.f32 %v993, %v1348
    %v1350 = vpop.f32.mrb[0].mxu0
    %v1351 = vpop.f32.mrb[0].mxu0
    %v1352 = vadd.f32 %v993, %v1351
    %v1353 = vpop.f32.mrb[0].mxu0
    %1354 = vmatprep.mubr.bf16.mxu0 %v913
    %1355 = vmatmul.mubr.bf16.gmra.mrb[0].mxu0 %v912
    %v1356 = vpop.f32.mrb[0].mxu0
    %v1357 = vadd.f32 %v993, %v1356
    %v1358 = vpop.f32.mrb[0].mxu0
    %v1359 = vpop.f32.mrb[0].mxu0
    %v1360 = vadd.f32 %v993, %v1359
    %v1361 = vpop.f32.mrb[0].mxu0
    %1362 = vmatprep.mubr.bf16.mxu0 %v915
    %1363 = vmatmul.mubr.bf16.gmra.mrb[0].mxu0 %v914
    %v1364 = vpop.f32.mrb[0].mxu0
    %v1365 = vadd.f32 %v993, %v1364
    %v1366 = vpop.f32.mrb[0].mxu0
    %v1367 = vpop.f32.mrb[0].mxu0
    %v1368 = vpop.f32.mrb[0].mxu0
    %1369 = vdwg.mxu0
    %1370 = vst [vmem:[#allocation17] sm:$0xff] %v1288
    %1371 = vst [vmem:[#allocation17 + $0x8] sm:$0xff] %v1290
    %1372 = vst [vmem:[#allocation17 + $0x10] sm:$0xff] %v1349
    %1373 = vst [vmem:[#allocation17 + $0x18] sm:$0xff] %v1292
    %1374 = vst [vmem:[#allocation17 + $0x20] sm:$0xff] %v1294
    %1375 = vst [vmem:[#allocation17 + $0x28] sm:$0xff] %v1352
    %1376 = vst [vmem:[#allocation17 + $0x30] sm:$0xff] %v1298
    %1377 = vst [vmem:[#allocation17 + $0x38] sm:$0xff] %v1300
    %1378 = vst [vmem:[#allocation17 + $0x40] sm:$0xff] %v1357
    %1379 = vst [vmem:[#allocation17 + $0x48] sm:$0xff] %v1302
    %1380 = vst [vmem:[#allocation17 + $0x50] sm:$0xff] %v1304
    %1381 = vst [vmem:[#allocation17 + $0x58] sm:$0xff] %v1360
    %1382 = vst [vmem:[#allocation17 + $0x60] sm:$0xff] %v1308
    %1383 = vst [vmem:[#allocation17 + $0x68] sm:$0xff] %v1310
    %1384 = vst [vmem:[#allocation17 + $0x70] sm:$0xff] %v1365
    // Predicated region
    $region74: #{tpu_custom_call.1} parent=1 // pred_check
      _
    $region75: #{tpu_custom_call.1} parent=1 // pred_check_branch
      %1386 = sbr.rel (0) target = $region77
    $region76: #{tpu_custom_call.1} parent=1 // pred_region
      %s1388 = ssub.s32 1920, 1920
      %1389 = vsyncadd [#allocation4], %s1388
      %s1390 = sshll.u32 [#allocation17], 4
      %s1391 = int_to_ptr.vmem [resolvable:$true] %s1390
      %1396 = dma.vmem_to_hbm [thread:$0]  %s1391, 1920, %s9, [#allocation4], 384, 384, 24
    $region77: #{tpu_custom_call.1} parent=1 // pred_fallthru
      _
    // Predicated region
    $region78: #{tpu_custom_call.1} parent=1 // pred_check
      _
    $region79: #{tpu_custom_call.1} parent=1 // pred_check_branch
      %1398 = sbr.rel (0) target = $region81
    $region80: #{tpu_custom_call.1} parent=1 // pred_region
      %1399 = dma.done [#allocation4], 1920
    $region81: #{tpu_custom_call.1} parent=1 // pred_fallthru
      _
    %1400 = vsyncpa [#allocation3], 1
    %1401 = vsyncpa [#allocation6], 1
    %1402 = vsyncpa [#allocation9], 1
    %1403 = vsyncpa [#allocation12], 1
    %1404 = vsyncpa [#allocation15], 1
    %1405 = vsyncpa [#allocation4], 1

</llo_original>
